<compile_context>
chip_gen: v6e
topology: v6e:2x2x1
jax: 0.10.0
libtpu: 0.0.40
codegen_flags: <defaults>
</compile_context>

<pallas_src>
import jax
import jax.numpy as jnp
import numpy as np
from jax.experimental import pallas as pl
from jax.experimental.pallas import tpu as pltpu


def _round_up(x, m):
    return (x + m - 1) // m * m


# --------------------------------------------------------------------------
# Kernels
# --------------------------------------------------------------------------
def make_fused_kernel(fs_max):
    """Hidden layer folded into the conv: one matmul per rolled tap of x."""

    def kernel(x_ref, wf_ref, bf_ref, wo_ref, bo_ref, mask_ref, out_ref):
        TB, S, V = x_ref.shape
        Fp = wf_ref.shape[2]
        M = TB * S

        x = x_ref[...]                                   # tile straight from DMA
        acc = jnp.dot(x.reshape(M, V).astype(jnp.bfloat16), wf_ref[0],
                      preferred_element_type=jnp.float32)
        for k in range(1, fs_max):                       # unrolled at trace time
            xk = pltpu.roll(x, shift=S - k, axis=1)      # xk[:, t] == x[:, (t+k) % S]
            acc = acc + jnp.dot(xk.reshape(M, V).astype(jnp.bfloat16), wf_ref[k],
                                preferred_element_type=jnp.float32)

        z = jnp.maximum(acc + bf_ref[...], 0.0).reshape(TB, S, Fp)
        z = z * mask_ref[...]                            # zero invalid / wrapped steps
        pooled = jnp.max(z, axis=1)                      # time max-pool -> [TB, Fp]

        out_ref[...] = (jnp.dot(pooled.astype(jnp.bfloat16), wo_ref[...],
                                preferred_element_type=jnp.float32)
                        + bo_ref[...])

    return kernel


def make_twostage_kernel(fs_max):
    """General path (large V): hidden matmul, then per-tap conv matmuls on h."""

    def kernel(x_ref, wh_ref, bh_ref, wc_ref, bc_ref, wo_ref, bo_ref, mask_ref,
               out_ref):
        TB, S, V = x_ref.shape
        Ep = wh_ref.shape[1]                             # lane-padded embedding dim
        Fp = wc_ref.shape[2]
        M = TB * S

        h = jnp.dot(x_ref[...].reshape(M, V).astype(jnp.bfloat16), wh_ref[...],
                    preferred_element_type=jnp.float32)
        h = (h + bh_ref[...]).reshape(TB, S, Ep)         # f32; rolled below

        acc = jnp.dot(h.reshape(M, Ep).astype(jnp.bfloat16), wc_ref[0],
                      preferred_element_type=jnp.float32)
        for k in range(1, fs_max):
            hk = pltpu.roll(h, shift=S - k, axis=1)
            acc = acc + jnp.dot(hk.reshape(M, Ep).astype(jnp.bfloat16), wc_ref[k],
                                preferred_element_type=jnp.float32)

        z = jnp.maximum(acc + bc_ref[...], 0.0).reshape(TB, S, Fp)
        z = z * mask_ref[...]
        pooled = jnp.max(z, axis=1)

        out_ref[...] = (jnp.dot(pooled.astype(jnp.bfloat16), wo_ref[...],
                                preferred_element_type=jnp.float32)
                        + bo_ref[...])

    return kernel


# --------------------------------------------------------------------------
# Parameter packing (lane-dense, per-tap stacked conv weights)
# --------------------------------------------------------------------------
def _build_packed_params(params, filter_sizes, sequence_length, fuse_hidden):
    wh_t, bh, conv_params, wo_t, bo = params
    wh_t = np.asarray(wh_t, np.float32)                  # [V, E]
    bh = np.asarray(bh, np.float32)                      # [E]
    V, E = wh_t.shape
    F = np.asarray(conv_params[0][0]).shape[0]
    n = len(filter_sizes)
    fs_max = max(filter_sizes)
    n_feat = n * F
    Fp = _round_up(max(n_feat, 128), 128)                # lane-dense pooled width
    C = np.asarray(wo_t).shape[1]
    Cp = _round_up(max(C, 128), 128)                     # lane-dense logits width
    S = sequence_length

    # Per-tap stacked conv weights: wc[k, e, i*F + f] = w_i[f, k, e]
    # (zero for k >= fs_i and for padded lanes) -> every branch in one matmul.
    wc = np.zeros((fs_max, E, Fp), np.float32)
    bc = np.zeros((1, Fp), np.float32)
    for i, (w, b) in enumerate(conv_params):
        w = np.asarray(w, np.float32)                    # [F, fs_i, E]
        fs = filter_sizes[i]
        wc[:fs, :, i * F:(i + 1) * F] = np.transpose(w, (1, 2, 0))
        bc[0, i * F:(i + 1) * F] = np.asarray(b, np.float32)

    wo_pad = np.zeros((Fp, Cp), np.float32)
    wo_pad[:n_feat, :C] = np.asarray(wo_t, np.float32)
    bo_pad = np.zeros((1, Cp), np.float32)
    bo_pad[0, :C] = np.asarray(bo, np.float32)

    # Time-validity mask: branch i has only S - fs_i + 1 valid conv positions.
    mask = np.zeros((1, S, Fp), np.float32)
    for i, fs in enumerate(filter_sizes):
        mask[0, :S - fs + 1, i * F:(i + 1) * F] = 1.0

    packed = dict(
        wo_pad=jnp.asarray(wo_pad, jnp.bfloat16),
        bo_pad=jnp.asarray(bo_pad, jnp.float32),
        mask=jnp.asarray(mask, jnp.float32),
    )

    if fuse_hidden:
        # Fold the hidden Linear into every conv tap (f32 compose, bf16 store).
        wf = np.einsum('ve,kef->kvf', wh_t, wc)                   # [fs_max, V, Fp]
        bf = bc + bh[None, :] @ wc.sum(axis=0)                    # [1, Fp]
        packed.update(
            w_fold=jnp.asarray(wf, jnp.bfloat16),
            b_fold=jnp.asarray(bf, jnp.float32),
        )
    else:
        Ep = _round_up(max(E, 128), 128)                          # lane-align h
        wh_pad = np.zeros((V, Ep), np.float32); wh_pad[:, :E] = wh_t
        bh_pad = np.zeros((1, Ep), np.float32); bh_pad[0, :E] = bh
        wc_pad = np.zeros((fs_max, Ep, Fp), np.float32); wc_pad[:, :E, :] = wc
        packed.update(
            wh_pad=jnp.asarray(wh_pad, jnp.bfloat16),
            bh_pad=jnp.asarray(bh_pad, jnp.float32),
            wc_pad=jnp.asarray(wc_pad, jnp.bfloat16),
            bc=jnp.asarray(bc, jnp.float32),
        )

    return packed, fs_max, Fp, Cp


# --------------------------------------------------------------------------
# VMEM sizing / batch-tile choice
# --------------------------------------------------------------------------
def _vmem_capacity_bytes():
    try:
        cap = getattr(pltpu.get_tpu_info(), "vmem_capacity_bytes", None)
        if cap:
            return int(cap)
    except Exception:
        pass
    return 64 * 1024 * 1024        # conservative fallback (v7x per-TensorCore VMEM)


def _choose_batch_tile(B, per_row_bytes, weight_bytes, budget_bytes):
    """Largest batch tile fitting the budget, preferring an even grid >= 2
    (so the 'parallel' batch axis can shard across v7x's two TensorCores)."""
    avail = max(budget_bytes - weight_bytes, per_row_bytes)
    max_rows = max(1, avail // per_row_bytes)
    cands = sorted({t for t in range(8, B + 1, 8) if B % t == 0} | {B})
    fitting = [t for t in cands if t <= max_rows] or [cands[0]]
    even_grid = [t for t in fitting if (B // t) >= 2 and (B // t) % 2 == 0]
    return int(max(even_grid) if even_grid else max(fitting))


# --------------------------------------------------------------------------
# Forward wrapper
# --------------------------------------------------------------------------
def textcnn_forward(x, params, filter_sizes, num_classes, *, batch_tile=None,
                    vmem_budget_bytes=None):
    B, S, V = x.shape
    E = params[0].shape[1]
    F = params[2][0][0].shape[0]
    fs_max = max(filter_sizes)
    Fp_guess = _round_up(max(len(filter_sizes) * F, 128), 128)

    # Fold the hidden Linear into the conv only while the folded weight stays
    # small; for a real vocab-sized V keep the two-stage path.
    fuse_hidden = fs_max * V * Fp_guess * 2 <= 8 * 1024 * 1024

    packed, fs_max, Fp, Cp = _build_packed_params(params, filter_sizes, S,
                                                  fuse_hidden)

    cap = _vmem_capacity_bytes()
    limit_cap = min(max(cap * 3 // 4, 32 * 1024 * 1024), 100 * 1024 * 1024)
    if vmem_budget_bytes is None:
        vmem_budget_bytes = limit_cap * 3 // 4

    # Conservative VMEM model: resident weights counted twice (Pallas
    # double-buffers every input; we do not rely on pl.Buffered(1) here).
    if fuse_hidden:
        weight_bytes = 2 * (fs_max * V * Fp * 2 + Fp * 4 + Fp * Cp * 2 + Cp * 4
                            + S * Fp * 4)
        per_row = (2 * S * V * 4            # streamed x tile (double-buffered)
                   + 2 * Cp * 4             # streamed out tile (double-buffered)
                   + 2 * S * V * (4 + 2)    # rolled tap + bf16 cast copies
                   + 3 * S * Fp * 4)        # acc / relu / masked activations
    else:
        Ep = packed["wh_pad"].shape[1]
        weight_bytes = 2 * (V * Ep * 2 + Ep * 4 + fs_max * Ep * Fp * 2 + Fp * 4
                            + Fp * Cp * 2 + Cp * 4 + S * Fp * 4)
        per_row = (2 * S * V * 4 + 2 * Cp * 4 + S * V * 2
                   + 2 * S * Ep * 4 + S * Ep * 2 + 3 * S * Fp * 4)

    if batch_tile is None:
        batch_tile = _choose_batch_tile(B, per_row, weight_bytes,
                                        vmem_budget_bytes)
    assert B % batch_tile == 0, (B, batch_tile)
    TB = batch_tile

    vmem_limit = int(min(max(2 * (weight_bytes + per_row * TB),
                             32 * 1024 * 1024), limit_cap))

    def resident(shape):
        ndim = len(shape)
        return pl.BlockSpec(shape, lambda i: (0,) * ndim)

    if fuse_hidden:
        kernel = make_fused_kernel(fs_max)
        in_specs = [
            pl.BlockSpec((TB, S, V), lambda i: (i, 0, 0)),   # streamed x tile
            resident((fs_max, V, Fp)),                       # folded conv weights
            resident((1, Fp)),                               # folded conv bias
            resident((Fp, Cp)),                              # output W^T (padded)
            resident((1, Cp)),                               # output bias (padded)
            resident((1, S, Fp)),                            # time-validity mask
        ]
        args = (x, packed["w_fold"], packed["b_fold"], packed["wo_pad"],
                packed["bo_pad"], packed["mask"])
    else:
        kernel = make_twostage_kernel(fs_max)
        Ep = packed["wh_pad"].shape[1]
        in_specs = [
            pl.BlockSpec((TB, S, V), lambda i: (i, 0, 0)),
            resident((V, Ep)), resident((1, Ep)),
            resident((fs_max, Ep, Fp)), resident((1, Fp)),
            resident((Fp, Cp)), resident((1, Cp)),
            resident((1, S, Fp)),
        ]
        args = (x, packed["wh_pad"], packed["bh_pad"], packed["wc_pad"],
                packed["bc"], packed["wo_pad"], packed["bo_pad"], packed["mask"])

    out = pl.pallas_call(
        kernel,
        out_shape=jax.ShapeDtypeStruct((B, Cp), jnp.float32),
        grid_spec=pltpu.PrefetchScalarGridSpec(
            num_scalar_prefetch=0,
            grid=(B // TB,),
            in_specs=in_specs,
            out_specs=pl.BlockSpec((TB, Cp), lambda i: (i, 0)),
        ),
        compiler_params=pltpu.CompilerParams(
            dimension_semantics=("parallel",),    # shard batch across TCs (v7x)
            vmem_limit_bytes=vmem_limit,
        ),
    )(*args)
    return out[:, :num_classes]


# --------------------------------------------------------------------------
# Plain-JAX f32 reference (matches the PyTorch forward semantics)
# --------------------------------------------------------------------------
def textcnn_reference(x, params, filter_sizes):
    wh_t, bh, conv_params, wo_t, bo = params
    h = x @ wh_t + bh                               # [B, S, E]
    S = x.shape[1]
    pooled = []
    for i, (w, b) in enumerate(conv_params):
        fs = filter_sizes[i]
        T = S - fs + 1
        acc = jnp.zeros((x.shape[0], T, w.shape[0]), jnp.float32)
        for k in range(fs):
            acc = acc + jnp.einsum('bte,fe->btf', h[:, k:k + T, :], w[:, k, :])
        z = jnp.maximum(acc + b, 0.0)
        pooled.append(jnp.max(z, axis=1))
    hp = jnp.concatenate(pooled, axis=-1)
    return hp @ wo_t + bo


if __name__ == "__main__":
    # Module hyperparameters (num_filters == len(filter_sizes), as the forward
    # loop `for i in range(num_filters)` indexing filter_sizes[i] implies).
    num_filters = 3
    filter_sizes = (2, 3, 4)
    vocab_size = 16
    embedding_size = 32
    num_classes = 4
    sequence_length = 8
    batch = 16             # gives a 2-step "parallel" batch grid
    num_filters_total = num_filters * len(filter_sizes)

    key = jax.random.PRNGKey(0)
    ks = jax.random.split(key, 11)

    # hidden_layer: nn.Linear(vocab_size, embedding_size) -> weight [E, V], bias [E]
    wh = jax.random.normal(ks[0], (embedding_size, vocab_size), jnp.float32) * 0.1
    bh = jax.random.normal(ks[1], (embedding_size,), jnp.float32) * 0.1

    # conv[i]: nn.Conv2d(1, num_filters, (filter_sizes[i], embedding_size))
    conv_params = []
    for i, fs in enumerate(filter_sizes):
        w4 = jax.random.normal(
            ks[2 + 2 * i], (num_filters, 1, fs, embedding_size), jnp.float32) * 0.1
        b = jax.random.normal(ks[3 + 2 * i], (num_filters,), jnp.float32) * 0.1
        conv_params.append((w4[:, 0, :, :], b))      # squeeze in-channel -> [F, fs, E]

    # output_layer: nn.Linear(num_filters_total, num_classes)
    wo = jax.random.normal(
        ks[2 + 2 * len(filter_sizes)], (num_classes, num_filters_total),
        jnp.float32) * 0.1
    bo = jax.random.normal(
        ks[3 + 2 * len(filter_sizes)], (num_classes,), jnp.float32) * 0.1

    params = (wh.T, bh, conv_params, wo.T, bo)
    x = jax.random.normal(ks[10], (batch, sequence_length, vocab_size), jnp.float32)

    out = textcnn_forward(x, params, filter_sizes, num_classes)
    out = jax.block_until_ready(out)
    assert out.shape == (batch, num_classes)

    ref = textcnn_reference(x, params, filter_sizes)
    # bf16 MXU operands (f32 accumulation) -> compare to the f32 reference at
    # bf16-level tolerance.
    np.testing.assert_allclose(np.asarray(out), np.asarray(ref),
                               rtol=2e-2, atol=2e-2)

    print("KERNEL_OK")
</pallas_src>

<mosaic_0001>
module attributes {stable_mosaic.version = 11 : i64} {
  func.func @kernel(%arg0: i32, %arg1: memref<8x8x16xf32, #tpu.memory_space<vmem>>, %arg2: memref<4x16x128xbf16, #tpu.memory_space<vmem>>, %arg3: memref<1x128xf32, #tpu.memory_space<vmem>>, %arg4: memref<128x128xbf16, #tpu.memory_space<vmem>>, %arg5: memref<1x128xf32, #tpu.memory_space<vmem>>, %arg6: memref<1x8x128xf32, #tpu.memory_space<vmem>>, %arg7: memref<8x128xf32, #tpu.memory_space<vmem>>) attributes {dimension_semantics = [#tpu.dimension_semantics<parallel>], iteration_bounds = array<i64: 2>, scalar_prefetch = 0 : i64, scratch_operands = 0 : i64, tpu.core_type = #tpu.core_type<tc>, window_params = [{transform_indices = @transform_0, window_bounds = array<i64: 8, 8, 16>}, {pipeline_mode = #tpu.pipeline_mode<synchronous>, transform_indices = @transform_1, window_bounds = array<i64: 4, 16, 128>}, {pipeline_mode = #tpu.pipeline_mode<synchronous>, transform_indices = @transform_2, window_bounds = array<i64: 1, 128>}, {pipeline_mode = #tpu.pipeline_mode<synchronous>, transform_indices = @transform_3, window_bounds = array<i64: 128, 128>}, {pipeline_mode = #tpu.pipeline_mode<synchronous>, transform_indices = @transform_4, window_bounds = array<i64: 1, 128>}, {pipeline_mode = #tpu.pipeline_mode<synchronous>, transform_indices = @transform_5, window_bounds = array<i64: 1, 8, 128>}, {transform_indices = @transform_6, window_bounds = array<i64: 8, 128>}]} {
    %c0 = arith.constant 0 : index
    %c0_0 = arith.constant 0 : index
    %c0_1 = arith.constant 0 : index
    %0 = vector.load %arg1[%c0, %c0_0, %c0_1] : memref<8x8x16xf32, #tpu.memory_space<vmem>>, vector<8x8x16xf32>
    %1 = vector.shape_cast %0 : vector<8x8x16xf32> to vector<64x16xf32>
    %2 = arith.truncf %1 : vector<64x16xf32> to vector<64x16xbf16>
    %c0_2 = arith.constant 0 : index
    %c0_3 = arith.constant 0 : index
    %c0_4 = arith.constant 0 : index
    %3 = vector.load %arg2[%c0_2, %c0_3, %c0_4] : memref<4x16x128xbf16, #tpu.memory_space<vmem>>, vector<1x16x128xbf16>
    %4 = vector.shape_cast %3 : vector<1x16x128xbf16> to vector<16x128xbf16>
    %cst = arith.constant dense<0.000000e+00> : vector<64x128xf32>
    %5 = tpu.matmul %2, %4, %cst {dimension_numbers = #tpu.dot_dimension_numbers<[1], [0], [0], [1], [0, 0, 1, 1], [], []>} : vector<64x16xbf16>, vector<16x128xbf16>, vector<64x128xf32> -> vector<64x128xf32>
    %c7_i32 = arith.constant 7 : i32
    %6 = tpu.dynamic_rotate %0 by %c7_i32 dim 1 : vector<8x8x16xf32>, i32 -> vector<8x8x16xf32>
    %7 = vector.shape_cast %6 : vector<8x8x16xf32> to vector<64x16xf32>
    %8 = arith.truncf %7 : vector<64x16xf32> to vector<64x16xbf16>
    %c1 = arith.constant 1 : index
    %c0_5 = arith.constant 0 : index
    %c0_6 = arith.constant 0 : index
    %9 = vector.load %arg2[%c1, %c0_5, %c0_6] : memref<4x16x128xbf16, #tpu.memory_space<vmem>>, vector<1x16x128xbf16>
    %10 = vector.shape_cast %9 : vector<1x16x128xbf16> to vector<16x128xbf16>
    %cst_7 = arith.constant dense<0.000000e+00> : vector<64x128xf32>
    %11 = tpu.matmul %8, %10, %cst_7 {dimension_numbers = #tpu.dot_dimension_numbers<[1], [0], [0], [1], [0, 0, 1, 1], [], []>} : vector<64x16xbf16>, vector<16x128xbf16>, vector<64x128xf32> -> vector<64x128xf32>
    %12 = arith.addf %5, %11 : vector<64x128xf32>
    %c6_i32 = arith.constant 6 : i32
    %13 = tpu.dynamic_rotate %0 by %c6_i32 dim 1 : vector<8x8x16xf32>, i32 -> vector<8x8x16xf32>
    %14 = vector.shape_cast %13 : vector<8x8x16xf32> to vector<64x16xf32>
    %15 = arith.truncf %14 : vector<64x16xf32> to vector<64x16xbf16>
    %c2 = arith.constant 2 : index
    %c0_8 = arith.constant 0 : index
    %c0_9 = arith.constant 0 : index
    %16 = vector.load %arg2[%c2, %c0_8, %c0_9] : memref<4x16x128xbf16, #tpu.memory_space<vmem>>, vector<1x16x128xbf16>
    %17 = vector.shape_cast %16 : vector<1x16x128xbf16> to vector<16x128xbf16>
    %cst_10 = arith.constant dense<0.000000e+00> : vector<64x128xf32>
    %18 = tpu.matmul %15, %17, %cst_10 {dimension_numbers = #tpu.dot_dimension_numbers<[1], [0], [0], [1], [0, 0, 1, 1], [], []>} : vector<64x16xbf16>, vector<16x128xbf16>, vector<64x128xf32> -> vector<64x128xf32>
    %19 = arith.addf %12, %18 : vector<64x128xf32>
    %c5_i32 = arith.constant 5 : i32
    %20 = tpu.dynamic_rotate %0 by %c5_i32 dim 1 : vector<8x8x16xf32>, i32 -> vector<8x8x16xf32>
    %21 = vector.shape_cast %20 : vector<8x8x16xf32> to vector<64x16xf32>
    %22 = arith.truncf %21 : vector<64x16xf32> to vector<64x16xbf16>
    %c3 = arith.constant 3 : index
    %c0_11 = arith.constant 0 : index
    %c0_12 = arith.constant 0 : index
    %23 = vector.load %arg2[%c3, %c0_11, %c0_12] : memref<4x16x128xbf16, #tpu.memory_space<vmem>>, vector<1x16x128xbf16>
    %24 = vector.shape_cast %23 : vector<1x16x128xbf16> to vector<16x128xbf16>
    %cst_13 = arith.constant dense<0.000000e+00> : vector<64x128xf32>
    %25 = tpu.matmul %22, %24, %cst_13 {dimension_numbers = #tpu.dot_dimension_numbers<[1], [0], [0], [1], [0, 0, 1, 1], [], []>} : vector<64x16xbf16>, vector<16x128xbf16>, vector<64x128xf32> -> vector<64x128xf32>
    %26 = arith.addf %19, %25 : vector<64x128xf32>
    %c0_14 = arith.constant 0 : index
    %c0_15 = arith.constant 0 : index
    %27 = vector.load %arg3[%c0_14, %c0_15] : memref<1x128xf32, #tpu.memory_space<vmem>>, vector<1x128xf32>
    %28 = vector.broadcast %27 : vector<1x128xf32> to vector<64x128xf32>
    %29 = arith.addf %26, %28 : vector<64x128xf32>
    %cst_16 = arith.constant 0.000000e+00 : f32
    %30 = vector.broadcast %cst_16 : f32 to vector<64x128xf32>
    %31 = arith.maximumf %29, %30 : vector<64x128xf32>
    %32 = vector.shape_cast %31 : vector<64x128xf32> to vector<8x8x128xf32>
    %c0_17 = arith.constant 0 : index
    %c0_18 = arith.constant 0 : index
    %c0_19 = arith.constant 0 : index
    %33 = vector.load %arg6[%c0_17, %c0_18, %c0_19] : memref<1x8x128xf32, #tpu.memory_space<vmem>>, vector<1x8x128xf32>
    %34 = vector.broadcast %33 : vector<1x8x128xf32> to vector<8x8x128xf32>
    %35 = arith.mulf %32, %34 : vector<8x8x128xf32>
    %cst_20 = arith.constant dense<0xFF800000> : vector<8x128xf32>
    %36 = vector.multi_reduction <maximumf>, %35, %cst_20 [1] : vector<8x8x128xf32> to vector<8x128xf32>
    %37 = arith.truncf %36 : vector<8x128xf32> to vector<8x128xbf16>
    %c0_21 = arith.constant 0 : index
    %c0_22 = arith.constant 0 : index
    %38 = vector.load %arg4[%c0_21, %c0_22] : memref<128x128xbf16, #tpu.memory_space<vmem>>, vector<128x128xbf16>
    %cst_23 = arith.constant dense<0.000000e+00> : vector<8x128xf32>
    %39 = tpu.matmul %37, %38, %cst_23 {dimension_numbers = #tpu.dot_dimension_numbers<[1], [0], [0], [1], [0, 0, 1, 1], [], []>} : vector<8x128xbf16>, vector<128x128xbf16>, vector<8x128xf32> -> vector<8x128xf32>
    %c0_24 = arith.constant 0 : index
    %c0_25 = arith.constant 0 : index
    %40 = vector.load %arg5[%c0_24, %c0_25] : memref<1x128xf32, #tpu.memory_space<vmem>>, vector<1x128xf32>
    %41 = vector.broadcast %40 : vector<1x128xf32> to vector<8x128xf32>
    %42 = arith.addf %39, %41 : vector<8x128xf32>
    %c0_26 = arith.constant 0 : index
    %c0_27 = arith.constant 0 : index
    %43 = vector.load %arg7[%c0_26, %c0_27] : memref<8x128xf32, #tpu.memory_space<vmem>>, vector<8x128xf32>
    tpu.vector_store %arg7[%c0_26, %c0_27], %42 {strides = array<i32>} : memref<8x128xf32, #tpu.memory_space<vmem>>, vector<8x128xf32>,
    return
  }
  func.func @transform_0(%arg0: i32) -> (i32, i32, i32) {
    %c0_i32 = arith.constant 0 : i32
    %c0_i32_0 = arith.constant 0 : i32
    %c0_i32_1 = arith.constant 0 : i32
    return %arg0, %c0_i32, %c0_i32_0 : i32, i32, i32
  }
  func.func @transform_1(%arg0: i32) -> (i32, i32, i32) {
    %c0_i32 = arith.constant 0 : i32
    %c0_i32_0 = arith.constant 0 : i32
    %c0_i32_1 = arith.constant 0 : i32
    %c0_i32_2 = arith.constant 0 : i32
    return %c0_i32, %c0_i32_0, %c0_i32_1 : i32, i32, i32
  }
  func.func @transform_2(%arg0: i32) -> (i32, i32) {
    %c0_i32 = arith.constant 0 : i32
    %c0_i32_0 = arith.constant 0 : i32
    %c0_i32_1 = arith.constant 0 : i32
    return %c0_i32, %c0_i32_0 : i32, i32
  }
  func.func @transform_3(%arg0: i32) -> (i32, i32) {
    %c0_i32 = arith.constant 0 : i32
    %c0_i32_0 = arith.constant 0 : i32
    %c0_i32_1 = arith.constant 0 : i32
    return %c0_i32, %c0_i32_0 : i32, i32
  }
  func.func @transform_4(%arg0: i32) -> (i32, i32) {
    %c0_i32 = arith.constant 0 : i32
    %c0_i32_0 = arith.constant 0 : i32
    %c0_i32_1 = arith.constant 0 : i32
    return %c0_i32, %c0_i32_0 : i32, i32
  }
  func.func @transform_5(%arg0: i32) -> (i32, i32, i32) {
    %c0_i32 = arith.constant 0 : i32
    %c0_i32_0 = arith.constant 0 : i32
    %c0_i32_1 = arith.constant 0 : i32
    %c0_i32_2 = arith.constant 0 : i32
    return %c0_i32, %c0_i32_0, %c0_i32_1 : i32, i32, i32
  }
  func.func @transform_6(%arg0: i32) -> (i32, i32) {
    %c0_i32 = arith.constant 0 : i32
    %c0_i32_0 = arith.constant 0 : i32
    return %arg0, %c0_i32 : i32, i32
  }
}

</mosaic_0001>

<llo_original>
// kernel: tpu_custom_call.1
$region0: #{tpu_custom_call.1}
  #allocation0 [shape = 'u32[]', space=smem, size = 0x4, offset = 0x4, fixed_abs, tag = 'smem constant byte address 0x4 - core index']
  #allocation1 [shape = 'u32[144,128]{1,0:T(1,128)}', space=vmem, size = 0x12000, scoped, tag = 'internal scratch']
  %s0 = inlined_call_operand.hbm [shape: f32[16,8,16], index: 0, kind: input, shape index: {}]
  %s1 = inlined_call_operand.hbm [shape: bf16[4,16,128], index: 1, kind: input, shape index: {}]
  %s2 = inlined_call_operand.vmem [shape: f32[1,128], index: 2, kind: input, shape index: {}]
  %s3 = inlined_call_operand.hbm [shape: bf16[128,128], index: 3, kind: input, shape index: {}]
  %s4 = inlined_call_operand.hbm [shape: f32[1,128], index: 4, kind: input, shape index: {}]
  %s5 = inlined_call_operand.vmem [shape: f32[1,8,128], index: 5, kind: input, shape index: {}]
  %s6 = inlined_call_operand.hbm [shape: f32[16,128], index: 6, kind: output, shape index: {}]
  %s7 = sld [smem:[#allocation0]]
  $region73: #{tpu_custom_call.1} parent=0
    _
  %s9 = ssub.s32 1, %s7
  %s10 = scalar_select 0, %s9, %s7
  $region1: #{tpu_custom_call.1} parent=0
    #allocation2 [shape = 'u8[65536]{0}', space=vmem, size = 0x10000, scoped, tag = 'input window, operand 0']
    #allocation3 [shape = 's32[2]{0}', space=sflag, size = 0x8, scoped, tag = 'scoped memory for tpu_custom_call.1']
    #allocation4 [shape = 's32[2]{0}', space=sflag, size = 0x8, scoped, tag = 'scoped memory for tpu_custom_call.1']
    #allocation5 [shape = 'u8[16384]{0}', space=vmem, size = 0x4000, scoped, tag = 'input window, operand 1, single buffered']
    #allocation6 [shape = 's32[1]{0}', space=sflag, size = 0x4, scoped, tag = 'scoped memory for tpu_custom_call.1']
    #allocation7 [shape = 'u8[32768]{0}', space=vmem, size = 0x8000, scoped, tag = 'input window, operand 3, single buffered']
    #allocation8 [shape = 'u8[512]{0}', space=vmem, size = 0x400, scoped, tag = 'input window, operand 4, single buffered']
    #allocation9 [shape = 's32[1]{0}', space=sflag, size = 0x4, scoped, tag = 'scoped memory for tpu_custom_call.1']
    #allocation10 [shape = 'u8[8192]{0}', space=vmem, size = 0x2000, scoped, tag = 'output window, operand 0']
    %11 = vsyncpa [#allocation3], 0
    %s12 = scalar_lea.sflag [#allocation3], 1
    %13 = vsyncpa %s12, 0
    %14 = vsyncpa [#allocation6], 0
    %15 = vsyncpa [#allocation9], 0
    %16 = vsyncpa [#allocation4], 0
    %s17 = scalar_lea.sflag [#allocation4], 1
    %18 = vsyncpa %s17, 0
    loop: start=0, step=1, limit=4
    $region2: #{tpu_custom_call.1} parent=1 // loop_pre_header
      _
    $region3: #{tpu_custom_call.1} parent=1 // loop_header
      %s20 = sphi 0, %s24
      %p21 = scmp.ge.s32.totalorder %s20, 4
      %s30 = sphi 0, %s32
      %s33 = sphi 0, %s30
      %s34 = sphi 0, %s33
      %s50 = sphi 0, %s34
      %s54 = sphi 0, %s54
      %s56 = sphi 0, %s54
      %s57 = sphi 0, %s56
      %s71 = sphi 0, %s57
      %s75 = sphi 0, %s75
      %s77 = sphi 0, %s75
      %s78 = sphi 0, %s77
      %s92 = sphi 0, %s78
      %s96 = sphi 0, %s96
      %s98 = sphi 0, %s96
      %s99 = sphi 0, %s98
      %s113 = sphi 0, %s99
      %s117 = sphi 0, %s117
      %s119 = sphi 0, %s117
      %s120 = sphi 0, %s119
      %s134 = sphi 0, %s120
      %s138 = sphi 0, %s138
      %s140 = sphi 0, %s138
      %s141 = sphi 0, %s140
      %s155 = sphi 0, %s141
      %s161 = sphi 0, %s163
      %s164 = sphi 0, %s161
      %s165 = sphi 0, %s164
      %s181 = sphi 0, %s165
    $region4: #{tpu_custom_call.1} parent=1 // loop_header_branch
      %23 = sbr.rel (%p21) target = $region8
    $region5: #{tpu_custom_call.1} parent=1 // loop_body
      %s25 = ssub.s32 %s20, 1
      %s26 = ssub.s32 %s20, 2
      %s27 = sadd.s32 %s20, 1
      %s28 = ssub.s32 %s20, %s27
      %p29 = scmp.eq.s32.totalorder %s28, 0
      %s31 = sadd.s32 %s30, 1
      %s32 = scalar_select %p29, %s30, %s31
      %p35 = pneg %p29
      %p36 = scmp.eq.s32.totalorder %s20, 1
      %p37 = por %p35, %p36
      %p38 = scmp.ne.s32.totalorder %s30, %s33
      %p39 = scmp.eq.s32.totalorder %s20, 0
      %p40 = por %p38, %p39
      %p41 = scmp.ne.s32.totalorder %s30, %s33
      %p42 = scmp.eq.s32.totalorder %s25, 1
      %p43 = por %p41, %p42
      %p44 = scmp.ne.s32.totalorder %s33, %s34
      %p45 = scmp.eq.s32.totalorder %s25, 0
      %p46 = por %p44, %p45
      %p47 = scmp.ne.s32.totalorder %s33, %s34
      %p48 = scmp.eq.s32.totalorder %s26, 1
      %p49 = por %p47, %p48
      %p51 = scmp.ne.s32.totalorder %s34, %s50
      %p52 = scmp.eq.s32.totalorder %s26, 0
      %p53 = por %p51, %p52
      %s55 = sadd.s32 %s54, 1
      %p58 = scmp.eq.s32.totalorder %s20, 1
      %p59 = scmp.ne.s32.totalorder %s54, %s56
      %p60 = scmp.eq.s32.totalorder %s20, 0
      %p61 = por %p59, %p60
      %p62 = scmp.ne.s32.totalorder %s54, %s56
      %p63 = scmp.eq.s32.totalorder %s25, 1
      %p64 = por %p62, %p63
      %p65 = scmp.ne.s32.totalorder %s56, %s57
      %p66 = scmp.eq.s32.totalorder %s25, 0
      %p67 = por %p65, %p66
      %p68 = scmp.ne.s32.totalorder %s56, %s57
      %p69 = scmp.eq.s32.totalorder %s26, 1
      %p70 = por %p68, %p69
      %p72 = scmp.ne.s32.totalorder %s57, %s71
      %p73 = scmp.eq.s32.totalorder %s26, 0
      %p74 = por %p72, %p73
      %s76 = sadd.s32 %s75, 1
      %p79 = scmp.eq.s32.totalorder %s20, 1
      %p80 = scmp.ne.s32.totalorder %s75, %s77
      %p81 = scmp.eq.s32.totalorder %s20, 0
      %p82 = por %p80, %p81
      %p83 = scmp.ne.s32.totalorder %s75, %s77
      %p84 = scmp.eq.s32.totalorder %s25, 1
      %p85 = por %p83, %p84
      %p86 = scmp.ne.s32.totalorder %s77, %s78
      %p87 = scmp.eq.s32.totalorder %s25, 0
      %p88 = por %p86, %p87
      %p89 = scmp.ne.s32.totalorder %s77, %s78
      %p90 = scmp.eq.s32.totalorder %s26, 1
      %p91 = por %p89, %p90
      %p93 = scmp.ne.s32.totalorder %s78, %s92
      %p94 = scmp.eq.s32.totalorder %s26, 0
      %p95 = por %p93, %p94
      %s97 = sadd.s32 %s96, 1
      %p100 = scmp.eq.s32.totalorder %s20, 1
      %p101 = scmp.ne.s32.totalorder %s96, %s98
      %p102 = scmp.eq.s32.totalorder %s20, 0
      %p103 = por %p101, %p102
      %p104 = scmp.ne.s32.totalorder %s96, %s98
      %p105 = scmp.eq.s32.totalorder %s25, 1
      %p106 = por %p104, %p105
      %p107 = scmp.ne.s32.totalorder %s98, %s99
      %p108 = scmp.eq.s32.totalorder %s25, 0
      %p109 = por %p107, %p108
      %p110 = scmp.ne.s32.totalorder %s98, %s99
      %p111 = scmp.eq.s32.totalorder %s26, 1
      %p112 = por %p110, %p111
      %p114 = scmp.ne.s32.totalorder %s99, %s113
      %p115 = scmp.eq.s32.totalorder %s26, 0
      %p116 = por %p114, %p115
      %s118 = sadd.s32 %s117, 1
      %p121 = scmp.eq.s32.totalorder %s20, 1
      %p122 = scmp.ne.s32.totalorder %s117, %s119
      %p123 = scmp.eq.s32.totalorder %s20, 0
      %p124 = por %p122, %p123
      %p125 = scmp.ne.s32.totalorder %s117, %s119
      %p126 = scmp.eq.s32.totalorder %s25, 1
      %p127 = por %p125, %p126
      %p128 = scmp.ne.s32.totalorder %s119, %s120
      %p129 = scmp.eq.s32.totalorder %s25, 0
      %p130 = por %p128, %p129
      %p131 = scmp.ne.s32.totalorder %s119, %s120
      %p132 = scmp.eq.s32.totalorder %s26, 1
      %p133 = por %p131, %p132
      %p135 = scmp.ne.s32.totalorder %s120, %s134
      %p136 = scmp.eq.s32.totalorder %s26, 0
      %p137 = por %p135, %p136
      %s139 = sadd.s32 %s138, 1
      %p142 = scmp.eq.s32.totalorder %s20, 1
      %p143 = scmp.ne.s32.totalorder %s138, %s140
      %p144 = scmp.eq.s32.totalorder %s20, 0
      %p145 = por %p143, %p144
      %p146 = scmp.ne.s32.totalorder %s138, %s140
      %p147 = scmp.eq.s32.totalorder %s25, 1
      %p148 = por %p146, %p147
      %p149 = scmp.ne.s32.totalorder %s140, %s141
      %p150 = scmp.eq.s32.totalorder %s25, 0
      %p151 = por %p149, %p150
      %p152 = scmp.ne.s32.totalorder %s140, %s141
      %p153 = scmp.eq.s32.totalorder %s26, 1
      %p154 = por %p152, %p153
      %p156 = scmp.ne.s32.totalorder %s141, %s155
      %p157 = scmp.eq.s32.totalorder %s26, 0
      %p158 = por %p156, %p157
      %s159 = ssub.s32 %s20, %s27
      %p160 = scmp.eq.s32.totalorder %s159, 0
      %s162 = sadd.s32 %s161, 1
      %s163 = scalar_select %p160, %s161, %s162
      %p166 = pneg %p160
      %p167 = scmp.eq.s32.totalorder %s20, 1
      %p168 = por %p166, %p167
      %p169 = scmp.ne.s32.totalorder %s161, %s164
      %p170 = scmp.eq.s32.totalorder %s20, 0
      %p171 = por %p169, %p170
      %p172 = scmp.ne.s32.totalorder %s161, %s164
      %p173 = scmp.eq.s32.totalorder %s25, 1
      %p174 = por %p172, %p173
      %p175 = scmp.ne.s32.totalorder %s164, %s165
      %p176 = scmp.eq.s32.totalorder %s25, 0
      %p177 = por %p175, %p176
      %p178 = scmp.ne.s32.totalorder %s164, %s165
      %p179 = scmp.eq.s32.totalorder %s26, 1
      %p180 = por %p178, %p179
      %p182 = scmp.ne.s32.totalorder %s165, %s181
      %p183 = scmp.eq.s32.totalorder %s26, 0
      %p184 = por %p182, %p183
      %p185 = scmp.le.s32.totalorder 1, %s20
      %p186 = scmp.lt.s32.totalorder %s20, 3
      %p187 = pnand %p185, %p186
      %p188 = pneg %p187
      // Predicated region
      $region9: #{tpu_custom_call.1} parent=5 // pred_check
        _
      $region10: #{tpu_custom_call.1} parent=5 // pred_check_branch
        %190 = sbr.rel (%p187) target = $region12
      $region11: #{tpu_custom_call.1} parent=5 // pred_region
        %s191 = ssub.s32 %s20, 1
        // Predicated region
        $region13: #{tpu_custom_call.1} parent=11 // pred_check
          %p192 = pneg %p67
        $region14: #{tpu_custom_call.1} parent=11 // pred_check_branch
          %194 = sbr.rel (%p192) target = $region16
        $region15: #{tpu_custom_call.1} parent=11 // pred_region
          %s196 = ssub.s32 512, 512
          %197 = vsyncadd [#allocation6], %s196
          %s198 = sshll.u32 [#allocation5], 4
          %s199 = int_to_ptr.vmem [resolvable:$true] %s198
          %204 = dma.hbm_to_vmem [thread:$0]  %s1, 512, %s199, [#allocation6], 64, 64, 4
        $region16: #{tpu_custom_call.1} parent=11 // pred_fallthru
          _
        // Predicated region
        $region17: #{tpu_custom_call.1} parent=11 // pred_check
          %p205 = pneg %p88
        $region18: #{tpu_custom_call.1} parent=11 // pred_check_branch
          %207 = sbr.rel (%p205) target = $region20
        $region19: #{tpu_custom_call.1} parent=11 // pred_region
          _
        $region20: #{tpu_custom_call.1} parent=11 // pred_fallthru
          _
        // Predicated region
        $region21: #{tpu_custom_call.1} parent=11 // pred_check
          %p208 = pneg %p109
        $region22: #{tpu_custom_call.1} parent=11 // pred_check_branch
          %210 = sbr.rel (%p208) target = $region24
        $region23: #{tpu_custom_call.1} parent=11 // pred_region
          %s212 = ssub.s32 1024, 1024
          %213 = vsyncadd [#allocation6], %s212
          %s214 = sshll.u32 [#allocation7], 4
          %s215 = int_to_ptr.vmem [resolvable:$true] %s214
          %220 = dma.hbm_to_vmem [thread:$0]  %s3, 1024, %s215, [#allocation6], 64, 64, 4
        $region24: #{tpu_custom_call.1} parent=11 // pred_fallthru
          _
        // Predicated region
        $region25: #{tpu_custom_call.1} parent=11 // pred_check
          %p221 = pneg %p130
        $region26: #{tpu_custom_call.1} parent=11 // pred_check_branch
          %223 = sbr.rel (%p221) target = $region28
        $region27: #{tpu_custom_call.1} parent=11 // pred_region
          %s225 = ssub.s32 16, 16
          %226 = vsyncadd [#allocation9], %s225
          %s228 = sshll.u32 [#allocation8], 4
          %s229 = int_to_ptr.vmem [resolvable:$true] %s228
          %231 = dma.hbm_to_vmem [thread:$0]  %s4, 16, %s229, [#allocation9]
        $region28: #{tpu_custom_call.1} parent=11 // pred_fallthru
          _
        // Predicated region
        $region29: #{tpu_custom_call.1} parent=11 // pred_check
          %p232 = pneg %p151
        $region30: #{tpu_custom_call.1} parent=11 // pred_check_branch
          %234 = sbr.rel (%p232) target = $region32
        $region31: #{tpu_custom_call.1} parent=11 // pred_region
          _
        $region32: #{tpu_custom_call.1} parent=11 // pred_fallthru
          _
      $region12: #{tpu_custom_call.1} parent=5 // pred_fallthru
        _
      %p235 = scmp.lt.s32.totalorder %s20, 2
      // Predicated region
      $region33: #{tpu_custom_call.1} parent=5 // pred_check
        %p236 = pneg %p235
      $region34: #{tpu_custom_call.1} parent=5 // pred_check_branch
        %238 = sbr.rel (%p236) target = $region36
      $region35: #{tpu_custom_call.1} parent=5 // pred_region
        // Predicated region
        $region37: #{tpu_custom_call.1} parent=35 // pred_check
          %p239 = pneg %p40
        $region38: #{tpu_custom_call.1} parent=35 // pred_check_branch
          %241 = sbr.rel (%p239) target = $region40
        $region39: #{tpu_custom_call.1} parent=35 // pred_region
          %s242 = sand.u32 %s30, 1
          %s243 = scalar_lea.sflag [#allocation3], %s242
          %s244 = sand.u32 %s30, 1
          %s245 = smul.addr %s244, 64
          %s246 = scalar_lea.vmem [#allocation2], %s245
          %s247 = smul.u32 8, %s20
          %s249 = ssub.s32 1024, 1024
          %250 = vsyncadd %s243, %s249
          %s251 = smul.addr %s247, 128
          %s252 = scalar_lea.hbm %s0, %s251
          %s253 = sshll.u32 %s246, 4
          %s254 = int_to_ptr.vmem [resolvable:$true] %s253
          %259 = dma.hbm_to_vmem [thread:$0]  %s252, 1024, %s254, %s243, 128, 128, 8
        $region40: #{tpu_custom_call.1} parent=35 // pred_fallthru
          _
      $region36: #{tpu_custom_call.1} parent=5 // pred_fallthru
        _
      %p260 = scmp.le.s32.totalorder 1, %s20
      %p261 = scmp.lt.s32.totalorder %s20, 3
      %p262 = pnand %p260, %p261
      %p263 = pneg %p262
      // Predicated region
      $region41: #{tpu_custom_call.1} parent=5 // pred_check
        _
      $region42: #{tpu_custom_call.1} parent=5 // pred_check_branch
        %265 = sbr.rel (%p262) target = $region44
      $region43: #{tpu_custom_call.1} parent=5 // pred_region
        %s266 = ssub.s32 %s20, 1
        %s267 = sand.u32 %s33, 1
        %s268 = scalar_lea.sflag [#allocation3], %s267
        %s269 = sand.u32 %s33, 1
        %s270 = smul.addr %s269, 64
        %s271 = scalar_lea.vmem [#allocation2], %s270
        // Predicated region
        $region45: #{tpu_custom_call.1} parent=43 // pred_check
          %p272 = pneg %p46
        $region46: #{tpu_custom_call.1} parent=43 // pred_check_branch
          %274 = sbr.rel (%p272) target = $region48
        $region47: #{tpu_custom_call.1} parent=43 // pred_region
          %275 = dma.done %s268, 1024
        $region48: #{tpu_custom_call.1} parent=43 // pred_fallthru
          _
        // Predicated region
        $region49: #{tpu_custom_call.1} parent=43 // pred_check
          %p276 = pneg %p67
        $region50: #{tpu_custom_call.1} parent=43 // pred_check_branch
          %278 = sbr.rel (%p276) target = $region52
        $region51: #{tpu_custom_call.1} parent=43 // pred_region
          %279 = dma.done [#allocation6], 512
        $region52: #{tpu_custom_call.1} parent=43 // pred_fallthru
          _
        // Predicated region
        $region53: #{tpu_custom_call.1} parent=43 // pred_check
          %p280 = pneg %p109
        $region54: #{tpu_custom_call.1} parent=43 // pred_check_branch
          %282 = sbr.rel (%p280) target = $region56
        $region55: #{tpu_custom_call.1} parent=43 // pred_region
          %283 = dma.done [#allocation6], 1024
        $region56: #{tpu_custom_call.1} parent=43 // pred_fallthru
          _
        // Predicated region
        $region57: #{tpu_custom_call.1} parent=43 // pred_check
          %p284 = pneg %p130
        $region58: #{tpu_custom_call.1} parent=43 // pred_check_branch
          %286 = sbr.rel (%p284) target = $region60
        $region59: #{tpu_custom_call.1} parent=43 // pred_region
          %287 = dma.done [#allocation9], 16
        $region60: #{tpu_custom_call.1} parent=43 // pred_fallthru
          _
        %s288 = sand.u32 %s33, 1
        %s289 = scalar_lea.sflag [#allocation3], %s288
        %s290 = sand.u32 %s33, 1
        %s291 = smul.addr %s290, 64
        %s292 = scalar_lea.vmem [#allocation2], %s291
        %p293 = pneg %p46
        %p294 = pneg %p43
        %p295 = pneg %p67
        %p296 = pneg %p64
        %p297 = pneg %p88
        %p298 = pneg %p85
        %p299 = pneg %p109
        %p300 = pneg %p106
        %p301 = pneg %p130
        %p302 = pneg %p127
        %p303 = pneg %p151
        %p304 = pneg %p148
        %p305 = pneg %p177
        %p306 = pneg %p174
        %s307 = sand.u32 %s164, 1
        %s308 = scalar_lea.sflag [#allocation4], %s307
        %s309 = sand.u32 %s164, 1
        %s310 = smul.addr %s309, 8
        %s311 = scalar_lea.vmem [#allocation10], %s310
        %s312 = smul.u32 8, %s25
        %v314 = vld [vmem:[%s271] sm:$0xff]
        %v315 = vld [vmem:[%s271 + $0x8] sm:$0xff]
        %v316 = vld [vmem:[%s271 + $0x10] sm:$0xff]
        %v317 = vld [vmem:[%s271 + $0x18] sm:$0xff]
        %v318 = vld [vmem:[%s271 + $0x20] sm:$0xff]
        %v319 = vld [vmem:[%s271 + $0x28] sm:$0xff]
        %v320 = vld [vmem:[%s271 + $0x30] sm:$0xff]
        %v321 = vld [vmem:[%s271 + $0x38] sm:$0xff]
        %v322 = vpack.c.bf16 %v315, %v314
        %v323 = vpack.c.bf16 %v317, %v316
        %v324 = vpack.c.bf16 %v319, %v318
        %v325 = vpack.c.bf16 %v321, %v320
        %v326 = vld [vmem:[#allocation5] sm:$0xf]
        %v327 = vld [vmem:[#allocation5 + $0x4] sm:$0xf]
        %v328 = vrot.slane %v314, 1
        %v329 = vrot.slane %v315, 1
        %v330 = vrot.slane %v316, 1
        %v331 = vrot.slane %v317, 1
        %v332 = vrot.slane %v318, 1
        %v333 = vrot.slane %v319, 1
        %v334 = vrot.slane %v320, 1
        %v335 = vrot.slane %v321, 1
        %v336 = vpack.c.bf16 %v329, %v328
        %v337 = vpack.c.bf16 %v331, %v330
        %v338 = vpack.c.bf16 %v333, %v332
        %v339 = vpack.c.bf16 %v335, %v334
        %s340 = scalar_lea.vmem [#allocation5], 8
        %v341 = vld [vmem:[%s340] sm:$0xf]
        %v342 = vld [vmem:[%s340 + $0x4] sm:$0xf]
        %v345 = vunpack.c.l.b16 %v341
        %v346 = vunpack.c.l.b16 %v342
        %v347 = vpack.c.b16 %v346, %v345
        %vm349 = vcmask 130048
        %v351 = vsel %vm349, %v336, 0
        %v354 = vsel %vm349, %v337, 0
        %v357 = vsel %vm349, %v338, 0
        %v360 = vsel %vm349, %v339, 0
        %362 = vmatprep.subr.bf16.mxu0 0
        %363 = vmatpush1.bf16.msra.mxu0 0
        %364 = vmatprep.subr.bf16.mxu0 0
        %365 = vmatpush1.bf16.msra.mxu0 0
        %366 = vmatprep.subr.bf16.mxu0 0
        %367 = vmatpush1.bf16.msra.mxu0 0
        %368 = vmatprep.subr.bf16.mxu0 0
        %369 = vmatpush1.bf16.msra.mxu0 0
        %370 = vmatprep.subr.bf16.mxu0 0
        %371 = vmatpush1.bf16.msra.mxu0 0
        %372 = vmatprep.subr.bf16.mxu0 0
        %373 = vmatpush1.bf16.msra.mxu0 0
        %374 = vmatprep.subr.bf16.mxu0 0
        %375 = vmatpush1.bf16.msra.mxu0 0
        %376 = vmatprep.subr.bf16.mxu0 0
        %377 = vmatpush1.bf16.msra.mxu0 %v347
        %378 = vmatprep.subr.bf16.mxu0 0
        %379 = vmatpush2.bf16.msra.mxu0 0
        %380 = vmatprep.subr.bf16.mxu0 0
        %381 = vmatpush2.bf16.msra.mxu0 0
        %382 = vmatprep.subr.bf16.mxu0 0
        %383 = vmatpush2.bf16.msra.mxu0 0
        %384 = vmatprep.subr.bf16.mxu0 0
        %385 = vmatpush2.bf16.msra.mxu0 0
        %386 = vmatprep.subr.bf16.mxu0 0
        %387 = vmatpush2.bf16.msra.mxu0 0
        %388 = vmatprep.subr.bf16.mxu0 0
        %389 = vmatpush2.bf16.msra.mxu0 0
        %390 = vmatprep.subr.bf16.mxu0 0
        %391 = vmatpush2.bf16.msra.mxu0 0
        %392 = vmatprep.subr.bf16.mxu0 0
        %393 = vmatpush2.bf16.msra.mxu0 0
        %394 = vmatprep.mubr.bf16.mxu0 0
        %395 = vmatmul.mubr.bf16.gmra.mxu0 %v351
        %v396 = vpop.f32.mrf.mxu0
        %v397 = vadd.f32 0.0, %v396
        %v398 = vpop.f32.mrf.mxu0
        %v399 = vpop.f32.mrf.mxu0
        %v400 = vadd.f32 0.0, %v399
        %v401 = vpop.f32.mrf.mxu0
        %402 = vmatprep.mubr.bf16.mxu0 0
        %403 = vmatmul.mubr.bf16.gmra.mxu0 %v354
        %v404 = vpop.f32.mrf.mxu0
        %v405 = vadd.f32 0.0, %v404
        %v406 = vpop.f32.mrf.mxu0
        %v407 = vpop.f32.mrf.mxu0
        %v408 = vadd.f32 0.0, %v407
        %v409 = vpop.f32.mrf.mxu0
        %410 = vmatprep.mubr.bf16.mxu0 0
        %411 = vmatmul.mubr.bf16.gmra.mxu0 %v357
        %v412 = vpop.f32.mrf.mxu0
        %v413 = vadd.f32 0.0, %v412
        %v414 = vpop.f32.mrf.mxu0
        %v415 = vpop.f32.mrf.mxu0
        %v416 = vadd.f32 0.0, %v415
        %v417 = vpop.f32.mrf.mxu0
        %418 = vmatprep.mubr.bf16.mxu0 0
        %419 = vmatmul.mubr.bf16.gmra.mxu0 %v360
        %v420 = vpop.f32.mrf.mxu0
        %v421 = vadd.f32 0.0, %v420
        %v422 = vpop.f32.mrf.mxu0
        %v423 = vpop.f32.mrf.mxu0
        %v424 = vadd.f32 0.0, %v423
        %v425 = vpop.f32.mrf.mxu0
        %426 = vdwg.mxu0
        %v429 = vunpack.c.l.b16 %v326
        %v430 = vunpack.c.l.b16 %v327
        %v431 = vpack.c.b16 %v430, %v429
        %v434 = vsel %vm349, %v322, 0
        %v437 = vsel %vm349, %v323, 0
        %v440 = vsel %vm349, %v324, 0
        %v443 = vsel %vm349, %v325, 0
        %445 = vmatprep.subr.bf16.mxu0 0
        %446 = vmatpush1.bf16.msra.mxu0 0
        %447 = vmatprep.subr.bf16.mxu0 0
        %448 = vmatpush1.bf16.msra.mxu0 0
        %449 = vmatprep.subr.bf16.mxu0 0
        %450 = vmatpush1.bf16.msra.mxu0 0
        %451 = vmatprep.subr.bf16.mxu0 0
        %452 = vmatpush1.bf16.msra.mxu0 0
        %453 = vmatprep.subr.bf16.mxu0 0
        %454 = vmatpush1.bf16.msra.mxu0 0
        %455 = vmatprep.subr.bf16.mxu0 0
        %456 = vmatpush1.bf16.msra.mxu0 0
        %457 = vmatprep.subr.bf16.mxu0 0
        %458 = vmatpush1.bf16.msra.mxu0 0
        %459 = vmatprep.subr.bf16.mxu0 0
        %460 = vmatpush1.bf16.msra.mxu0 %v431
        %461 = vmatprep.subr.bf16.mxu0 0
        %462 = vmatpush2.bf16.msra.mxu0 0
        %463 = vmatprep.subr.bf16.mxu0 0
        %464 = vmatpush2.bf16.msra.mxu0 0
        %465 = vmatprep.subr.bf16.mxu0 0
        %466 = vmatpush2.bf16.msra.mxu0 0
        %467 = vmatprep.subr.bf16.mxu0 0
        %468 = vmatpush2.bf16.msra.mxu0 0
        %469 = vmatprep.subr.bf16.mxu0 0
        %470 = vmatpush2.bf16.msra.mxu0 0
        %471 = vmatprep.subr.bf16.mxu0 0
        %472 = vmatpush2.bf16.msra.mxu0 0
        %473 = vmatprep.subr.bf16.mxu0 0
        %474 = vmatpush2.bf16.msra.mxu0 0
        %475 = vmatprep.subr.bf16.mxu0 0
        %476 = vmatpush2.bf16.msra.mxu0 0
        %477 = vmatprep.mubr.bf16.mxu0 0
        %478 = vmatmul.mubr.bf16.gmra.mxu0 %v434
        %v479 = vpop.f32.mrf.mxu0
        %v480 = vadd.f32 %v397, %v479
        %v481 = vpop.f32.mrf.mxu0
        %v482 = vpop.f32.mrf.mxu0
        %v483 = vadd.f32 %v400, %v482
        %v484 = vpop.f32.mrf.mxu0
        %485 = vmatprep.mubr.bf16.mxu0 0
        %486 = vmatmul.mubr.bf16.gmra.mxu0 %v437
        %v487 = vpop.f32.mrf.mxu0
        %v488 = vadd.f32 %v405, %v487
        %v489 = vpop.f32.mrf.mxu0
        %v490 = vpop.f32.mrf.mxu0
        %v491 = vadd.f32 %v408, %v490
        %v492 = vpop.f32.mrf.mxu0
        %493 = vmatprep.mubr.bf16.mxu0 0
        %494 = vmatmul.mubr.bf16.gmra.mxu0 %v440
        %v495 = vpop.f32.mrf.mxu0
        %v496 = vadd.f32 %v413, %v495
        %v497 = vpop.f32.mrf.mxu0
        %v498 = vpop.f32.mrf.mxu0
        %v499 = vadd.f32 %v416, %v498
        %v500 = vpop.f32.mrf.mxu0
        %501 = vmatprep.mubr.bf16.mxu0 0
        %502 = vmatmul.mubr.bf16.gmra.mxu0 %v443
        %v503 = vpop.f32.mrf.mxu0
        %v504 = vadd.f32 %v421, %v503
        %v505 = vpop.f32.mrf.mxu0
        %v506 = vpop.f32.mrf.mxu0
        %v507 = vadd.f32 %v424, %v506
        %v508 = vpop.f32.mrf.mxu0
        %509 = vdwg.mxu0
        %v510 = vrot.slane %v314, 2
        %v511 = vrot.slane %v315, 2
        %v512 = vrot.slane %v316, 2
        %v513 = vrot.slane %v317, 2
        %v514 = vrot.slane %v318, 2
        %v515 = vrot.slane %v319, 2
        %v516 = vrot.slane %v320, 2
        %v517 = vrot.slane %v321, 2
        %v518 = vpack.c.bf16 %v511, %v510
        %v519 = vpack.c.bf16 %v513, %v512
        %v520 = vpack.c.bf16 %v515, %v514
        %v521 = vpack.c.bf16 %v517, %v516
        %s522 = scalar_lea.vmem [#allocation5], 16
        %v523 = vld [vmem:[%s522] sm:$0xf]
        %v524 = vld [vmem:[%s522 + $0x4] sm:$0xf]
        %v527 = vunpack.c.l.b16 %v523
        %v528 = vunpack.c.l.b16 %v524
        %v529 = vpack.c.b16 %v528, %v527
        %v532 = vsel %vm349, %v518, 0
        %v535 = vsel %vm349, %v519, 0
        %v538 = vsel %vm349, %v520, 0
        %v541 = vsel %vm349, %v521, 0
        %543 = vmatprep.subr.bf16.mxu0 0
        %544 = vmatpush1.bf16.msra.mxu0 0
        %545 = vmatprep.subr.bf16.mxu0 0
        %546 = vmatpush1.bf16.msra.mxu0 0
        %547 = vmatprep.subr.bf16.mxu0 0
        %548 = vmatpush1.bf16.msra.mxu0 0
        %549 = vmatprep.subr.bf16.mxu0 0
        %550 = vmatpush1.bf16.msra.mxu0 0
        %551 = vmatprep.subr.bf16.mxu0 0
        %552 = vmatpush1.bf16.msra.mxu0 0
        %553 = vmatprep.subr.bf16.mxu0 0
        %554 = vmatpush1.bf16.msra.mxu0 0
        %555 = vmatprep.subr.bf16.mxu0 0
        %556 = vmatpush1.bf16.msra.mxu0 0
        %557 = vmatprep.subr.bf16.mxu0 0
        %558 = vmatpush1.bf16.msra.mxu0 %v529
        %559 = vmatprep.subr.bf16.mxu0 0
        %560 = vmatpush2.bf16.msra.mxu0 0
        %561 = vmatprep.subr.bf16.mxu0 0
        %562 = vmatpush2.bf16.msra.mxu0 0
        %563 = vmatprep.subr.bf16.mxu0 0
        %564 = vmatpush2.bf16.msra.mxu0 0
        %565 = vmatprep.subr.bf16.mxu0 0
        %566 = vmatpush2.bf16.msra.mxu0 0
        %567 = vmatprep.subr.bf16.mxu0 0
        %568 = vmatpush2.bf16.msra.mxu0 0
        %569 = vmatprep.subr.bf16.mxu0 0
        %570 = vmatpush2.bf16.msra.mxu0 0
        %571 = vmatprep.subr.bf16.mxu0 0
        %572 = vmatpush2.bf16.msra.mxu0 0
        %573 = vmatprep.subr.bf16.mxu0 0
        %574 = vmatpush2.bf16.msra.mxu0 0
        %575 = vmatprep.mubr.bf16.mxu0 0
        %576 = vmatmul.mubr.bf16.gmra.mxu0 %v532
        %v577 = vpop.f32.mrf.mxu0
        %v578 = vadd.f32 0.0, %v577
        %v579 = vpop.f32.mrf.mxu0
        %v580 = vpop.f32.mrf.mxu0
        %v581 = vadd.f32 0.0, %v580
        %v582 = vpop.f32.mrf.mxu0
        %583 = vmatprep.mubr.bf16.mxu0 0
        %584 = vmatmul.mubr.bf16.gmra.mxu0 %v535
        %v585 = vpop.f32.mrf.mxu0
        %v586 = vadd.f32 0.0, %v585
        %v587 = vpop.f32.mrf.mxu0
        %v588 = vpop.f32.mrf.mxu0
        %v589 = vadd.f32 0.0, %v588
        %v590 = vpop.f32.mrf.mxu0
        %591 = vmatprep.mubr.bf16.mxu0 0
        %592 = vmatmul.mubr.bf16.gmra.mxu0 %v538
        %v593 = vpop.f32.mrf.mxu0
        %v594 = vadd.f32 0.0, %v593
        %v595 = vpop.f32.mrf.mxu0
        %v596 = vpop.f32.mrf.mxu0
        %v597 = vadd.f32 0.0, %v596
        %v598 = vpop.f32.mrf.mxu0
        %599 = vmatprep.mubr.bf16.mxu0 0
        %600 = vmatmul.mubr.bf16.gmra.mxu0 %v541
        %v601 = vpop.f32.mrf.mxu0
        %v602 = vadd.f32 0.0, %v601
        %v603 = vpop.f32.mrf.mxu0
        %v604 = vpop.f32.mrf.mxu0
        %v605 = vadd.f32 0.0, %v604
        %v606 = vpop.f32.mrf.mxu0
        %607 = vdwg.mxu0
        %v608 = vadd.f32 %v480, %v578
        %v609 = vadd.f32 %v483, %v581
        %v610 = vadd.f32 %v488, %v586
        %v611 = vadd.f32 %v491, %v589
        %v612 = vadd.f32 %v496, %v594
        %v613 = vadd.f32 %v499, %v597
        %v614 = vadd.f32 %v504, %v602
        %v615 = vadd.f32 %v507, %v605
        %v616 = vrot.slane %v314, 3
        %v617 = vrot.slane %v315, 3
        %v618 = vrot.slane %v316, 3
        %v619 = vrot.slane %v317, 3
        %v620 = vrot.slane %v318, 3
        %v621 = vrot.slane %v319, 3
        %v622 = vrot.slane %v320, 3
        %v623 = vrot.slane %v321, 3
        %v624 = vpack.c.bf16 %v617, %v616
        %v625 = vpack.c.bf16 %v619, %v618
        %v626 = vpack.c.bf16 %v621, %v620
        %v627 = vpack.c.bf16 %v623, %v622
        %s628 = scalar_lea.vmem [#allocation5], 24
        %v629 = vld [vmem:[%s628] sm:$0xf]
        %v630 = vld [vmem:[%s628 + $0x4] sm:$0xf]
        %v633 = vunpack.c.l.b16 %v629
        %v634 = vunpack.c.l.b16 %v630
        %v635 = vpack.c.b16 %v634, %v633
        %v638 = vsel %vm349, %v624, 0
        %v641 = vsel %vm349, %v625, 0
        %v644 = vsel %vm349, %v626, 0
        %v647 = vsel %vm349, %v627, 0
        %649 = vmatprep.subr.bf16.mxu0 0
        %650 = vmatpush1.bf16.msra.mxu0 0
        %651 = vmatprep.subr.bf16.mxu0 0
        %652 = vmatpush1.bf16.msra.mxu0 0
        %653 = vmatprep.subr.bf16.mxu0 0
        %654 = vmatpush1.bf16.msra.mxu0 0
        %655 = vmatprep.subr.bf16.mxu0 0
        %656 = vmatpush1.bf16.msra.mxu0 0
        %657 = vmatprep.subr.bf16.mxu0 0
        %658 = vmatpush1.bf16.msra.mxu0 0
        %659 = vmatprep.subr.bf16.mxu0 0
        %660 = vmatpush1.bf16.msra.mxu0 0
        %661 = vmatprep.subr.bf16.mxu0 0
        %662 = vmatpush1.bf16.msra.mxu0 0
        %663 = vmatprep.subr.bf16.mxu0 0
        %664 = vmatpush1.bf16.msra.mxu0 %v635
        %665 = vmatprep.subr.bf16.mxu0 0
        %666 = vmatpush2.bf16.msra.mxu0 0
        %667 = vmatprep.subr.bf16.mxu0 0
        %668 = vmatpush2.bf16.msra.mxu0 0
        %669 = vmatprep.subr.bf16.mxu0 0
        %670 = vmatpush2.bf16.msra.mxu0 0
        %671 = vmatprep.subr.bf16.mxu0 0
        %672 = vmatpush2.bf16.msra.mxu0 0
        %673 = vmatprep.subr.bf16.mxu0 0
        %674 = vmatpush2.bf16.msra.mxu0 0
        %675 = vmatprep.subr.bf16.mxu0 0
        %676 = vmatpush2.bf16.msra.mxu0 0
        %677 = vmatprep.subr.bf16.mxu0 0
        %678 = vmatpush2.bf16.msra.mxu0 0
        %679 = vmatprep.subr.bf16.mxu0 0
        %680 = vmatpush2.bf16.msra.mxu0 0
        %681 = vmatprep.mubr.bf16.mxu0 0
        %682 = vmatmul.mubr.bf16.gmra.mxu0 %v638
        %v683 = vpop.f32.mrf.mxu0
        %v684 = vadd.f32 0.0, %v683
        %v685 = vpop.f32.mrf.mxu0
        %v686 = vpop.f32.mrf.mxu0
        %v687 = vadd.f32 0.0, %v686
        %v688 = vpop.f32.mrf.mxu0
        %689 = vmatprep.mubr.bf16.mxu0 0
        %690 = vmatmul.mubr.bf16.gmra.mxu0 %v641
        %v691 = vpop.f32.mrf.mxu0
        %v692 = vadd.f32 0.0, %v691
        %v693 = vpop.f32.mrf.mxu0
        %v694 = vpop.f32.mrf.mxu0
        %v695 = vadd.f32 0.0, %v694
        %v696 = vpop.f32.mrf.mxu0
        %697 = vmatprep.mubr.bf16.mxu0 0
        %698 = vmatmul.mubr.bf16.gmra.mxu0 %v644
        %v699 = vpop.f32.mrf.mxu0
        %v700 = vadd.f32 0.0, %v699
        %v701 = vpop.f32.mrf.mxu0
        %v702 = vpop.f32.mrf.mxu0
        %v703 = vadd.f32 0.0, %v702
        %v704 = vpop.f32.mrf.mxu0
        %705 = vmatprep.mubr.bf16.mxu0 0
        %706 = vmatmul.mubr.bf16.gmra.mxu0 %v647
        %v707 = vpop.f32.mrf.mxu0
        %v708 = vadd.f32 0.0, %v707
        %v709 = vpop.f32.mrf.mxu0
        %v710 = vpop.f32.mrf.mxu0
        %v711 = vadd.f32 0.0, %v710
        %v712 = vpop.f32.mrf.mxu0
        %713 = vdwg.mxu0
        %v714 = vadd.f32 %v608, %v684
        %v715 = vadd.f32 %v609, %v687
        %v716 = vadd.f32 %v610, %v692
        %v717 = vadd.f32 %v611, %v695
        %v718 = vadd.f32 %v612, %v700
        %v719 = vadd.f32 %v613, %v703
        %v720 = vadd.f32 %v614, %v708
        %v721 = vadd.f32 %v615, %v711
        %v722 = vld [vmem:[%s2] sm:$0x1]
        %v724 = vlaneseq
        %v725 = vshrl.u32 %v724, 7
        %v726 = vsub.s32 0, %v725
        %v727 = vrot.slane %v722, %v726
        %v729 = vadd.f32 %v714, %v727
        %v730 = vadd.f32 %v715, %v727
        %v731 = vadd.f32 %v716, %v727
        %v732 = vadd.f32 %v717, %v727
        %v733 = vadd.f32 %v718, %v727
        %v734 = vadd.f32 %v719, %v727
        %v735 = vadd.f32 %v720, %v727
        %v736 = vadd.f32 %v721, %v727
        %v737 = vmax.f32 %v729, 0.0
        %v738 = vmax.f32 %v730, 0.0
        %v739 = vmax.f32 %v731, 0.0
        %v740 = vmax.f32 %v732, 0.0
        %v741 = vmax.f32 %v733, 0.0
        %v742 = vmax.f32 %v734, 0.0
        %v743 = vmax.f32 %v735, 0.0
        %v744 = vmax.f32 %v736, 0.0
        %v745 = vld [vmem:[%s5] sm:$0xff]
        %v746 = vmul.f32 %v737, %v745
        %v747 = vmul.f32 %v738, %v745
        %v748 = vmul.f32 %v739, %v745
        %v749 = vmul.f32 %v740, %v745
        %v750 = vmul.f32 %v741, %v745
        %v751 = vmul.f32 %v742, %v745
        %v752 = vmul.f32 %v743, %v745
        %v753 = vmul.f32 %v744, %v745
        %v754 = vrot.slane %v746, 4
        %v755 = vmax.f32 %v746, %v754
        %v756 = vrot.slane %v755, 2
        %v757 = vmax.f32 %v755, %v756
        %v758 = vrot.slane %v757, 1
        %v759 = vmax.f32 %v757, %v758
        %v760 = vrot.slane %v747, 4
        %v761 = vmax.f32 %v747, %v760
        %v762 = vrot.slane %v761, 2
        %v763 = vmax.f32 %v761, %v762
        %v764 = vrot.slane %v763, 1
        %v765 = vmax.f32 %v763, %v764
        %v766 = vrot.slane %v748, 4
        %v767 = vmax.f32 %v748, %v766
        %v768 = vrot.slane %v767, 2
        %v769 = vmax.f32 %v767, %v768
        %v770 = vrot.slane %v769, 1
        %v771 = vmax.f32 %v769, %v770
        %v772 = vrot.slane %v749, 4
        %v773 = vmax.f32 %v749, %v772
        %v774 = vrot.slane %v773, 2
        %v775 = vmax.f32 %v773, %v774
        %v776 = vrot.slane %v775, 1
        %v777 = vmax.f32 %v775, %v776
        %v778 = vrot.slane %v750, 4
        %v779 = vmax.f32 %v750, %v778
        %v780 = vrot.slane %v779, 2
        %v781 = vmax.f32 %v779, %v780
        %v782 = vrot.slane %v781, 1
        %v783 = vmax.f32 %v781, %v782
        %v784 = vrot.slane %v751, 4
        %v785 = vmax.f32 %v751, %v784
        %v786 = vrot.slane %v785, 2
        %v787 = vmax.f32 %v785, %v786
        %v788 = vrot.slane %v787, 1
        %v789 = vmax.f32 %v787, %v788
        %v790 = vrot.slane %v752, 4
        %v791 = vmax.f32 %v752, %v790
        %v792 = vrot.slane %v791, 2
        %v793 = vmax.f32 %v791, %v792
        %v794 = vrot.slane %v793, 1
        %v795 = vmax.f32 %v793, %v794
        %v796 = vrot.slane %v753, 4
        %v797 = vmax.f32 %v753, %v796
        %v798 = vrot.slane %v797, 2
        %v799 = vmax.f32 %v797, %v798
        %v800 = vrot.slane %v799, 1
        %v801 = vmax.f32 %v799, %v800
        %v802 = vpack.c.bf16 %v759, %v759
        %v803 = vpack.c.bf16 %v765, %v765
        %v804 = vpack.c.bf16 %v771, %v771
        %v805 = vpack.c.bf16 %v777, %v777
        %v806 = vpack.c.bf16 %v783, %v783
        %v807 = vpack.c.bf16 %v789, %v789
        %v808 = vpack.c.bf16 %v795, %v795
        %v809 = vpack.c.bf16 %v801, %v801
        %v810 = vld [vmem:[#allocation7] sm:$0xf]
        %v811 = vld [vmem:[#allocation7 + $0x4] sm:$0xf]
        %v812 = vld [vmem:[#allocation7 + $0x8] sm:$0xf]
        %v813 = vld [vmem:[#allocation7 + $0xc] sm:$0xf]
        %v814 = vld [vmem:[#allocation7 + $0x10] sm:$0xf]
        %v815 = vld [vmem:[#allocation7 + $0x14] sm:$0xf]
        %v816 = vld [vmem:[#allocation7 + $0x18] sm:$0xf]
        %v817 = vld [vmem:[#allocation7 + $0x1c] sm:$0xf]
        %v818 = vld [vmem:[#allocation7 + $0x20] sm:$0xf]
        %v819 = vld [vmem:[#allocation7 + $0x24] sm:$0xf]
        %v820 = vld [vmem:[#allocation7 + $0x28] sm:$0xf]
        %v821 = vld [vmem:[#allocation7 + $0x2c] sm:$0xf]
        %v822 = vld [vmem:[#allocation7 + $0x30] sm:$0xf]
        %v823 = vld [vmem:[#allocation7 + $0x34] sm:$0xf]
        %v824 = vld [vmem:[#allocation7 + $0x38] sm:$0xf]
        %v825 = vld [vmem:[#allocation7 + $0x3c] sm:$0xf]
        %v826 = vld [vmem:[#allocation8] sm:$0x1]
        %v828 = vlaneseq
        %v829 = vshrl.u32 %v828, 7
        %v830 = vsub.s32 0, %v829
        %v831 = vrot.slane %v826, %v830
        %v841 = vunpack.c.l.b16 %v802
        %v842 = vunpack.c.l.b16 %v803
        %v843 = vunpack.c.l.b16 %v804
        %v844 = vunpack.c.l.b16 %v805
        %v845 = vunpack.c.l.b16 %v806
        %v846 = vunpack.c.l.b16 %v807
        %v847 = vunpack.c.l.b16 %v808
        %v848 = vunpack.c.l.b16 %v809
        %vm849 = vcmask 1041409
        %v850 = vsel %vm849, %v842, %v841
        %vm851 = vcmask 1042434
        %v852 = vsel %vm851, %v843, %v850
        %vm853 = vcmask 1043459
        %v854 = vsel %vm853, %v844, %v852
        %vm855 = vcmask 1044484
        %v856 = vsel %vm855, %v845, %v854
        %vm857 = vcmask 1045509
        %v858 = vsel %vm857, %v846, %v856
        %vm859 = vcmask 1046534
        %v860 = vsel %vm859, %v847, %v858
        %vm861 = vcmask 1047559
        %v862 = vsel %vm861, %v848, %v860
        %v863 = vpack.c.b16 %v862, %v862
        %v881 = vunpack.c.l.b16 %v810
        %v882 = vunpack.c.l.b16 %v811
        %v883 = vunpack.c.l.b16 %v812
        %v884 = vunpack.c.l.b16 %v813
        %v885 = vunpack.c.l.b16 %v814
        %v886 = vunpack.c.l.b16 %v815
        %v887 = vunpack.c.l.b16 %v816
        %v888 = vunpack.c.l.b16 %v817
        %v889 = vunpack.c.l.b16 %v818
        %v890 = vunpack.c.l.b16 %v819
        %v891 = vunpack.c.l.b16 %v820
        %v892 = vunpack.c.l.b16 %v821
        %v893 = vunpack.c.l.b16 %v822
        %v894 = vunpack.c.l.b16 %v823
        %v895 = vunpack.c.l.b16 %v824
        %v896 = vunpack.c.l.b16 %v825
        %v897 = vpack.c.b16 %v882, %v881
        %v898 = vpack.c.b16 %v884, %v883
        %v899 = vpack.c.b16 %v886, %v885
        %v900 = vpack.c.b16 %v888, %v887
        %v901 = vpack.c.b16 %v890, %v889
        %v902 = vpack.c.b16 %v892, %v891
        %v903 = vpack.c.b16 %v894, %v893
        %v904 = vpack.c.b16 %v896, %v895
        %913 = vmatprep.subr.bf16.mxu0 0
        %914 = vmatpush1.bf16.msra.mxu0 %v904
        %915 = vmatprep.subr.bf16.mxu0 0
        %916 = vmatpush1.bf16.msra.mxu0 %v903
        %917 = vmatprep.subr.bf16.mxu0 0
        %918 = vmatpush1.bf16.msra.mxu0 %v902
        %919 = vmatprep.subr.bf16.mxu0 0
        %920 = vmatpush1.bf16.msra.mxu0 %v901
        %921 = vmatprep.subr.bf16.mxu0 0
        %922 = vmatpush1.bf16.msra.mxu0 %v900
        %923 = vmatprep.subr.bf16.mxu0 0
        %924 = vmatpush1.bf16.msra.mxu0 %v899
        %925 = vmatprep.subr.bf16.mxu0 0
        %926 = vmatpush1.bf16.msra.mxu0 %v898
        %927 = vmatprep.subr.bf16.mxu0 0
        %928 = vmatpush1.bf16.msra.mxu0 %v897
        %929 = vmatprep.subr.bf16.mxu0 0
        %930 = vmatpush2.bf16.msra.mxu0 0
        %931 = vmatprep.subr.bf16.mxu0 0
        %932 = vmatpush2.bf16.msra.mxu0 0
        %933 = vmatprep.subr.bf16.mxu0 0
        %934 = vmatpush2.bf16.msra.mxu0 0
        %935 = vmatprep.subr.bf16.mxu0 0
        %936 = vmatpush2.bf16.msra.mxu0 0
        %937 = vmatprep.subr.bf16.mxu0 0
        %938 = vmatpush2.bf16.msra.mxu0 0
        %939 = vmatprep.subr.bf16.mxu0 0
        %940 = vmatpush2.bf16.msra.mxu0 0
        %941 = vmatprep.subr.bf16.mxu0 0
        %942 = vmatpush2.bf16.msra.mxu0 0
        %943 = vmatprep.subr.bf16.mxu0 0
        %944 = vmatpush2.bf16.msra.mxu0 0
        %945 = vmatprep.mubr.bf16.mxu0 0
        %946 = vmatmul.mubr.bf16.gmra.mxu0 %v863
        %v947 = vpop.f32.mrf.mxu0
        %v948 = vadd.f32 %v831, %v947
        %v949 = vpop.f32.mrf.mxu0
        %v950 = vpop.f32.mrf.mxu0
        %v951 = vpop.f32.mrf.mxu0
        %952 = vdwg.mxu0
        %953 = vst [vmem:[%s311] sm:$0xff] %v948
        %s954 = sand.u32 %s164, 1
        %s955 = scalar_lea.sflag [#allocation4], %s954
        %s956 = sand.u32 %s164, 1
        %s957 = smul.addr %s956, 8
        %s958 = scalar_lea.vmem [#allocation10], %s957
        // Predicated region
        $region61: #{tpu_custom_call.1} parent=43 // pred_check
          %p959 = pneg %p174
        $region62: #{tpu_custom_call.1} parent=43 // pred_check_branch
          %961 = sbr.rel (%p959) target = $region64
        $region63: #{tpu_custom_call.1} parent=43 // pred_region
          %s963 = ssub.s32 128, 128
          %964 = vsyncadd %s955, %s963
          %s965 = smul.addr %s25, 128
          %s966 = scalar_lea.hbm %s6, %s965
          %s968 = sshll.u32 %s958, 4
          %s969 = int_to_ptr.vmem [resolvable:$true] %s968
          %971 = dma.vmem_to_hbm [thread:$0]  %s969, 128, %s966, %s955
        $region64: #{tpu_custom_call.1} parent=43 // pred_fallthru
          _
      $region44: #{tpu_custom_call.1} parent=5 // pred_fallthru
        _
      %p972 = scmp.le.s32.totalorder 2, %s20
      // Predicated region
      $region65: #{tpu_custom_call.1} parent=5 // pred_check
        %p973 = pneg %p972
      $region66: #{tpu_custom_call.1} parent=5 // pred_check_branch
        %975 = sbr.rel (%p973) target = $region68
      $region67: #{tpu_custom_call.1} parent=5 // pred_region
        %s976 = ssub.s32 %s20, 2
        // Predicated region
        $region69: #{tpu_custom_call.1} parent=67 // pred_check
          %p977 = pneg %p180
        $region70: #{tpu_custom_call.1} parent=67 // pred_check_branch
          %979 = sbr.rel (%p977) target = $region72
        $region71: #{tpu_custom_call.1} parent=67 // pred_region
          %s980 = sand.u32 %s165, 1
          %s981 = scalar_lea.sflag [#allocation4], %s980
          %s982 = sand.u32 %s165, 1
          %s983 = smul.addr %s982, 8
          %s984 = scalar_lea.vmem [#allocation10], %s983
          %985 = dma.done %s981, 128
        $region72: #{tpu_custom_call.1} parent=67 // pred_fallthru
          _
      $region68: #{tpu_custom_call.1} parent=5 // pred_fallthru
        _
    $region6: #{tpu_custom_call.1} parent=1 // loop_footer
      %s24 = sadd.s32 1, %s20
    $region7: #{tpu_custom_call.1} parent=1 // loop_footer_branch
      %19 = sbr.rel target = $region3
    $region8: #{tpu_custom_call.1} parent=1 // loop_exit
      _
    %986 = vsyncpa [#allocation3], 1
    %s987 = scalar_lea.sflag [#allocation3], 1
    %988 = vsyncpa %s987, 1
    %989 = vsyncpa [#allocation6], 1
    %990 = vsyncpa [#allocation9], 1
    %991 = vsyncpa [#allocation4], 1
    %s992 = scalar_lea.sflag [#allocation4], 1
    %993 = vsyncpa %s992, 1

</llo_original>
